<compile_context>
chip_gen: v6e
topology: v6e:2x2x1
jax: 0.10.0
libtpu: 0.0.40
codegen_flags: <defaults>
</compile_context>

<pallas_src>
import functools

import jax
import jax.numpy as jnp
from jax.experimental import pallas as pl
from jax.experimental.pallas import tpu as pltpu

HIDDEN = 32          # hidden_size
NUM_LABELS = 2       # kernel is specialised for binary labels
BATCH = 8            # number of tasks
NUM_CONTRIB = 16     # contributors per task
LANE = 128           # TPU lane width


def _sigmoid(x):
    # exp runs on the EUP; approx reciprocal also runs on the EUP -> no VPU divide.
    return pl.reciprocal(1.0 + jnp.exp(-x), approx=True)


def dynamic_aggregation_kernel(x_ref, params_ref, labels_ref, out_ref, *,
                               hidden, label_col):
    # ---- unpack the single parameter slab ---------------------------------
    w1 = params_ref[0:hidden, :]                     # (H, H/2)
    b1 = params_ref[hidden:hidden + 1, :]            # (1, H/2)
    w2t = params_ref[hidden + 1:hidden + 2, :]       # (1, H/2)  Linear(H/2,1) transposed
    b2 = params_ref[hidden + 2:hidden + 3, 0:1]      # (1, 1)

    # ---- task difficulty MLP: Linear -> Swish -> (Dropout=id) -> Linear -> Sigmoid
    x = x_ref[...]                                                    # (B, H)
    h = jnp.dot(x, w1, preferred_element_type=jnp.float32) + b1      # (B, H/2)
    h = h * _sigmoid(h)                                               # Swish
    y = jnp.sum(h * w2t, axis=1, keepdims=True) + b2                  # (B, 1)
    diff = _sigmoid(y)                                                # (B, 1)

    # ---- hoisted masks (padding columns are -1 => all masks are 0) --------
    labels = labels_ref[...]                          # (B, W) int32, -1 padded
    validf = (labels != -1).astype(jnp.float32)       # (B, W)
    eq0f = (labels == 0).astype(jnp.float32)          # (B, W)
    eq1f = (labels == 1).astype(jnp.float32)          # (B, W)

    # ---- majority vote -> initial labels (first-max tie-break == label 0) -
    c0 = jnp.sum(eq0f, axis=1, keepdims=True)         # (B, 1)
    c1 = jnp.sum(eq1f, axis=1, keepdims=True)         # (B, 1)
    init_is1 = c1 > c0                                # (B, 1) bool

    # ---- per-contributor reliability = agreement rate with initial labels -
    agreef = jnp.where(init_is1, eq1f, eq0f)          # (B, W)
    agree = jnp.sum(agreef, axis=0, keepdims=True)    # (1, W)
    total = jnp.sum(validf, axis=0, keepdims=True)    # (1, W)
    rel = jnp.where(total > 0.0, agree / jnp.maximum(total, 1.0), 0.5)  # (1, W)

    # ---- weighted aggregation (fixed point of the torch EM loop) ----------
    w = rel * (1.0 - diff)                            # (B, W) via broadcast
    w0 = jnp.sum(eq0f * w, axis=1, keepdims=True)     # (B, 1)
    w1s = jnp.sum(eq1f * w, axis=1, keepdims=True)    # (B, 1)
    cur = jnp.where(w1s > w0, 1.0, 0.0)               # (B, 1) label as f32 (exact 0/1)

    # ---- single lane-dense store: rel in cols [0, C), label in col C ------
    col = jax.lax.broadcasted_iota(jnp.int32, out_ref.shape, 1)       # (B, W)
    out_ref[...] = jnp.where(col == label_col, cur, rel)


def dynamic_aggregation_forward(packed_params, task_embeddings, contributor_ids,
                                contributor_labels):
    """contributor_ids kept for interface parity; unused in the
    num_contributors=None path of the reference."""
    del contributor_ids
    B, H = task_embeddings.shape
    C = contributor_labels.shape[1]
    W = ((C + 1 + LANE - 1) // LANE) * LANE
    W = max(W, LANE)

    if task_embeddings.dtype != jnp.float32:
        task_embeddings = task_embeddings.astype(jnp.float32)
    if contributor_labels.dtype != jnp.int32:
        contributor_labels = contributor_labels.astype(jnp.int32)
    labels_p = jnp.pad(contributor_labels, ((0, 0), (0, W - C)), constant_values=-1)

    vmem = functools.partial(pl.BlockSpec, memory_space=pltpu.MemorySpace.VMEM)
    slab = pl.pallas_call(
        functools.partial(dynamic_aggregation_kernel, hidden=H, label_col=C),
        out_shape=jax.ShapeDtypeStruct((B, W), jnp.float32),
        in_specs=[vmem(), vmem(), vmem()],
        out_specs=vmem(),
    )(task_embeddings, packed_params, labels_p)

    labels = slab[:, C].astype(jnp.int32)      # exact: stored values are 0.0 / 1.0
    reliability = slab[:, :C]
    return labels, reliability


def init_params(key, hidden=HIDDEN):
    """Deterministic init matching torch nn.Linear shapes (uniform +-1/sqrt(fan_in))."""
    h2 = hidden // 2
    k1, k2, k3, k4 = jax.random.split(key, 4)
    lim1 = 1.0 / float(hidden) ** 0.5
    lim2 = 1.0 / float(h2) ** 0.5
    w1 = jax.random.uniform(k1, (hidden, h2), jnp.float32, -lim1, lim1)
    b1 = jax.random.uniform(k2, (h2,), jnp.float32, -lim1, lim1)
    w2 = jax.random.uniform(k3, (h2, 1), jnp.float32, -lim2, lim2)
    b2 = jax.random.uniform(k4, (1,), jnp.float32, -lim2, lim2)
    return w1, b1, w2, b2


def pack_params(w1, b1, w2, b2):
    """Pack all MLP params into one (H+3, H/2) f32 slab. Do this once at init."""
    H, H2 = w1.shape
    p = jnp.zeros((H + 3, H2), jnp.float32)
    p = p.at[:H, :].set(w1)
    p = p.at[H, :].set(b1)
    p = p.at[H + 1, :].set(w2.reshape(H2))
    p = p.at[H + 2, 0].set(b2[0])
    return p


if __name__ == "__main__":
    key = jax.random.PRNGKey(0)
    kp, kx, kl = jax.random.split(key, 3)

    w1, b1, w2, b2 = init_params(kp)
    packed_params = pack_params(w1, b1, w2, b2)   # packed once, reused per call

    task_embeddings = jax.random.normal(kx, (BATCH, HIDDEN), jnp.float32)
    contributor_labels = jax.random.randint(
        kl, (BATCH, NUM_CONTRIB), -1, NUM_LABELS).astype(jnp.int32)
    contributor_ids = jnp.broadcast_to(
        jnp.arange(NUM_CONTRIB, dtype=jnp.int32)[None, :], (BATCH, NUM_CONTRIB))

    labels, reliability = dynamic_aggregation_forward(
        packed_params, task_embeddings, contributor_ids, contributor_labels)
    jax.block_until_ready((labels, reliability))

    assert labels.shape == (BATCH,) and labels.dtype == jnp.int32
    assert reliability.shape == (BATCH, NUM_CONTRIB)
    print("KERNEL_OK")
</pallas_src>

<mosaic_0001>
module attributes {stable_mosaic.version = 11 : i64} {
  func.func @dynamic_aggregation_kernel(%arg0: memref<8x32xf32, #tpu.memory_space<vmem>>, %arg1: memref<35x16xf32, #tpu.memory_space<vmem>>, %arg2: memref<8x128xi32, #tpu.memory_space<vmem>>, %arg3: memref<8x128xf32, #tpu.memory_space<vmem>>) attributes {dimension_semantics = [], scalar_prefetch = 0 : i64, scratch_operands = 0 : i64, tpu.core_type = #tpu.core_type<tc>} {
    %c0 = arith.constant 0 : index
    %c0_0 = arith.constant 0 : index
    %0 = vector.load %arg1[%c0, %c0_0] : memref<35x16xf32, #tpu.memory_space<vmem>>, vector<32x16xf32>
    %c32 = arith.constant 32 : index
    %c0_1 = arith.constant 0 : index
    %1 = vector.load %arg1[%c32, %c0_1] : memref<35x16xf32, #tpu.memory_space<vmem>>, vector<1x16xf32>
    %c33 = arith.constant 33 : index
    %c0_2 = arith.constant 0 : index
    %2 = vector.load %arg1[%c33, %c0_2] : memref<35x16xf32, #tpu.memory_space<vmem>>, vector<1x16xf32>
    %c34 = arith.constant 34 : index
    %c0_3 = arith.constant 0 : index
    %3 = vector.load %arg1[%c34, %c0_3] : memref<35x16xf32, #tpu.memory_space<vmem>>, vector<1x1xf32>
    %c0_4 = arith.constant 0 : index
    %c0_5 = arith.constant 0 : index
    %4 = vector.load %arg0[%c0_4, %c0_5] : memref<8x32xf32, #tpu.memory_space<vmem>>, vector<8x32xf32>
    %cst = arith.constant dense<0.000000e+00> : vector<8x16xf32>
    %5 = tpu.matmul %4, %0, %cst {dimension_numbers = #tpu.dot_dimension_numbers<[1], [0], [0], [1], [0, 0, 1, 1], [], []>} : vector<8x32xf32>, vector<32x16xf32>, vector<8x16xf32> -> vector<8x16xf32>
    %6 = vector.broadcast %1 : vector<1x16xf32> to vector<8x16xf32>
    %7 = arith.addf %5, %6 : vector<8x16xf32>
    %cst_6 = arith.constant 0.000000e+00 : f32
    %8 = vector.broadcast %cst_6 : f32 to vector<8x16xf32>
    %9 = arith.subf %8, %7 : vector<8x16xf32>
    %10 = math.exp %9 : vector<8x16xf32>
    %cst_7 = arith.constant 1.000000e+00 : f32
    %11 = vector.broadcast %cst_7 : f32 to vector<8x16xf32>
    %12 = arith.addf %11, %10 : vector<8x16xf32>
    %13 = tpu.reciprocal %12 {approx = true} : vector<8x16xf32> -> vector<8x16xf32>
    %14 = arith.mulf %7, %13 : vector<8x16xf32>
    %15 = vector.broadcast %2 : vector<1x16xf32> to vector<8x16xf32>
    %16 = arith.mulf %14, %15 : vector<8x16xf32>
    %cst_8 = arith.constant dense<0.000000e+00> : vector<8xf32>
    %17 = vector.multi_reduction <add>, %16, %cst_8 [1] : vector<8x16xf32> to vector<8xf32>
    %18 = vector.shape_cast %17 : vector<8xf32> to vector<8x1xf32>
    %19 = vector.broadcast %3 : vector<1x1xf32> to vector<8x1xf32>
    %20 = arith.addf %18, %19 : vector<8x1xf32>
    %cst_9 = arith.constant 0.000000e+00 : f32
    %21 = vector.broadcast %cst_9 : f32 to vector<8x1xf32>
    %22 = arith.subf %21, %20 : vector<8x1xf32>
    %23 = math.exp %22 : vector<8x1xf32>
    %cst_10 = arith.constant 1.000000e+00 : f32
    %24 = vector.broadcast %cst_10 : f32 to vector<8x1xf32>
    %25 = arith.addf %24, %23 : vector<8x1xf32>
    %26 = tpu.reciprocal %25 {approx = true} : vector<8x1xf32> -> vector<8x1xf32>
    %c0_11 = arith.constant 0 : index
    %c0_12 = arith.constant 0 : index
    %27 = vector.load %arg2[%c0_11, %c0_12] : memref<8x128xi32, #tpu.memory_space<vmem>>, vector<8x128xi32>
    %c-1_i32 = arith.constant -1 : i32
    %28 = vector.broadcast %c-1_i32 : i32 to vector<8x128xi32>
    %29 = arith.cmpi ne, %27, %28 : vector<8x128xi32>
    %30 = arith.extui %29 : vector<8x128xi1> to vector<8x128xi32>
    %31 = arith.sitofp %30 : vector<8x128xi32> to vector<8x128xf32>
    %c0_i32 = arith.constant 0 : i32
    %32 = vector.broadcast %c0_i32 : i32 to vector<8x128xi32>
    %33 = arith.cmpi eq, %27, %32 : vector<8x128xi32>
    %34 = arith.extui %33 : vector<8x128xi1> to vector<8x128xi32>
    %35 = arith.sitofp %34 : vector<8x128xi32> to vector<8x128xf32>
    %c1_i32 = arith.constant 1 : i32
    %36 = vector.broadcast %c1_i32 : i32 to vector<8x128xi32>
    %37 = arith.cmpi eq, %27, %36 : vector<8x128xi32>
    %38 = arith.extui %37 : vector<8x128xi1> to vector<8x128xi32>
    %39 = arith.sitofp %38 : vector<8x128xi32> to vector<8x128xf32>
    %cst_13 = arith.constant dense<0.000000e+00> : vector<8xf32>
    %40 = vector.multi_reduction <add>, %35, %cst_13 [1] : vector<8x128xf32> to vector<8xf32>
    %41 = vector.shape_cast %40 : vector<8xf32> to vector<8x1xf32>
    %cst_14 = arith.constant dense<0.000000e+00> : vector<8xf32>
    %42 = vector.multi_reduction <add>, %39, %cst_14 [1] : vector<8x128xf32> to vector<8xf32>
    %43 = vector.shape_cast %42 : vector<8xf32> to vector<8x1xf32>
    %44 = arith.cmpf ogt, %43, %41 : vector<8x1xf32>
    %45 = vector.shape_cast %44 : vector<8x1xi1> to vector<8x1xi1>
    %46 = vector.broadcast %45 : vector<8x1xi1> to vector<8x128xi1>
    %47 = arith.select %46, %39, %35 : vector<8x128xi1>, vector<8x128xf32>
    %cst_15 = arith.constant dense<0.000000e+00> : vector<128xf32>
    %48 = vector.multi_reduction <add>, %47, %cst_15 [0] : vector<8x128xf32> to vector<128xf32>
    %49 = vector.shape_cast %48 : vector<128xf32> to vector<1x128xf32>
    %cst_16 = arith.constant dense<0.000000e+00> : vector<128xf32>
    %50 = vector.multi_reduction <add>, %31, %cst_16 [0] : vector<8x128xf32> to vector<128xf32>
    %51 = vector.shape_cast %50 : vector<128xf32> to vector<1x128xf32>
    %cst_17 = arith.constant 0.000000e+00 : f32
    %52 = vector.broadcast %cst_17 : f32 to vector<1x128xf32>
    %53 = arith.cmpf ogt, %51, %52 : vector<1x128xf32>
    %cst_18 = arith.constant 1.000000e+00 : f32
    %54 = vector.broadcast %cst_18 : f32 to vector<1x128xf32>
    %55 = arith.maximumf %51, %54 : vector<1x128xf32>
    %56 = arith.divf %49, %55 : vector<1x128xf32>
    %cst_19 = arith.constant 5.000000e-01 : f32
    %57 = vector.broadcast %cst_19 : f32 to vector<1x128xf32>
    %58 = arith.select %53, %56, %57 : vector<1x128xi1>, vector<1x128xf32>
    %cst_20 = arith.constant 1.000000e+00 : f32
    %59 = vector.broadcast %cst_20 : f32 to vector<8x1xf32>
    %60 = arith.subf %59, %26 : vector<8x1xf32>
    %61 = vector.broadcast %58 : vector<1x128xf32> to vector<8x128xf32>
    %62 = vector.broadcast %60 : vector<8x1xf32> to vector<8x128xf32>
    %63 = arith.mulf %61, %62 : vector<8x128xf32>
    %64 = arith.mulf %35, %63 : vector<8x128xf32>
    %cst_21 = arith.constant dense<0.000000e+00> : vector<8xf32>
    %65 = vector.multi_reduction <add>, %64, %cst_21 [1] : vector<8x128xf32> to vector<8xf32>
    %66 = vector.shape_cast %65 : vector<8xf32> to vector<8x1xf32>
    %67 = arith.mulf %39, %63 : vector<8x128xf32>
    %cst_22 = arith.constant dense<0.000000e+00> : vector<8xf32>
    %68 = vector.multi_reduction <add>, %67, %cst_22 [1] : vector<8x128xf32> to vector<8xf32>
    %69 = vector.shape_cast %68 : vector<8xf32> to vector<8x1xf32>
    %70 = arith.cmpf ogt, %69, %66 : vector<8x1xf32>
    %cst_23 = arith.constant 1.000000e+00 : f32
    %cst_24 = arith.constant 0.000000e+00 : f32
    %71 = vector.broadcast %cst_23 : f32 to vector<8x1xf32>
    %72 = vector.broadcast %cst_24 : f32 to vector<8x1xf32>
    %73 = arith.select %70, %71, %72 : vector<8x1xi1>, vector<8x1xf32>
    %74 = tpu.iota {dimensions = array<i32: 1>} : vector<8x128xi32>
    %c16_i32 = arith.constant 16 : i32
    %75 = vector.broadcast %c16_i32 : i32 to vector<8x128xi32>
    %76 = arith.cmpi eq, %74, %75 : vector<8x128xi32>
    %77 = vector.shape_cast %73 : vector<8x1xf32> to vector<8x1xf32>
    %78 = vector.broadcast %77 : vector<8x1xf32> to vector<8x128xf32>
    %79 = vector.shape_cast %58 : vector<1x128xf32> to vector<1x128xf32>
    %80 = vector.broadcast %79 : vector<1x128xf32> to vector<8x128xf32>
    %81 = arith.select %76, %78, %80 : vector<8x128xi1>, vector<8x128xf32>
    %c0_25 = arith.constant 0 : index
    %c0_26 = arith.constant 0 : index
    %82 = vector.load %arg3[%c0_25, %c0_26] : memref<8x128xf32, #tpu.memory_space<vmem>>, vector<8x128xf32>
    tpu.vector_store %arg3[%c0_25, %c0_26], %81 {strides = array<i32>} : memref<8x128xf32, #tpu.memory_space<vmem>>, vector<8x128xf32>,
    return
  }
}

</mosaic_0001>

<llo_original>
// kernel: tpu_custom_call.1
$region0: #{tpu_custom_call.1}
  #allocation0 [shape = 'u32[]', space=smem, size = 0x4, offset = 0x4, fixed_abs, tag = 'smem constant byte address 0x4 - core index']
  #allocation1 [shape = 'u32[144,128]{1,0:T(1,128)}', space=vmem, size = 0x12000, scoped, tag = 'internal scratch']
  %s0 = inlined_call_operand.vmem [shape: f32[8,32], index: 0, kind: input, shape index: {}]
  %s1 = inlined_call_operand.vmem [shape: f32[35,16], index: 1, kind: input, shape index: {}]
  %s2 = inlined_call_operand.vmem [shape: s32[8,128], index: 2, kind: input, shape index: {}]
  %s3 = inlined_call_operand.hbm [shape: f32[8,128], index: 3, kind: output, shape index: {}]
  %s4 = sld [smem:[#allocation0]]
  $region22: #{tpu_custom_call.1} parent=0
    _
  %s6 = ssub.s32 1, %s4
  %s7 = scalar_select 0, %s6, %s4
  $region1: #{tpu_custom_call.1} parent=0
    #allocation2 [shape = 'u8[4096]{0}', space=vmem, size = 0x1000, scoped, tag = 'output window, operand 0, single buffered']
    #allocation3 [shape = 's32[1]{0}', space=sflag, size = 0x4, scoped, tag = 'scoped memory for tpu_custom_call.1']
    %8 = vsyncpa [#allocation3], 0
    // Predicated region
    $region2: #{tpu_custom_call.1} parent=1 // pred_check
      _
    $region3: #{tpu_custom_call.1} parent=1 // pred_check_branch
      %10 = sbr.rel (0) target = $region5
    $region4: #{tpu_custom_call.1} parent=1 // pred_region
      _
    $region5: #{tpu_custom_call.1} parent=1 // pred_fallthru
      _
    // Predicated region
    $region6: #{tpu_custom_call.1} parent=1 // pred_check
      _
    $region7: #{tpu_custom_call.1} parent=1 // pred_check_branch
      %12 = sbr.rel (0) target = $region9
    $region8: #{tpu_custom_call.1} parent=1 // pred_region
      _
    $region9: #{tpu_custom_call.1} parent=1 // pred_fallthru
      _
    // Predicated region
    $region10: #{tpu_custom_call.1} parent=1 // pred_check
      _
    $region11: #{tpu_custom_call.1} parent=1 // pred_check_branch
      %14 = sbr.rel (0) target = $region13
    $region12: #{tpu_custom_call.1} parent=1 // pred_region
      _
    $region13: #{tpu_custom_call.1} parent=1 // pred_fallthru
      _
    %v15 = vld [vmem:[%s1] sm:$0xff]
    %v16 = vld [vmem:[%s1 + $0x8] sm:$0xff]
    %v17 = vld [vmem:[%s1 + $0x10] sm:$0xff]
    %v18 = vld [vmem:[%s1 + $0x18] sm:$0xff]
    %v19 = vld [vmem:[%s1 + $0x20] sm:$0x1]
    %v20 = vld [vmem:[%s1 + $0x21] sm:$0x1]
    %v21 = vld [vmem:[%s1 + $0x22] sm:$0x1]
    %v22 = vld [vmem:[%s0] sm:$0xff]
    %v23 = vlaneseq
    %v24 = vshrl.u32 %v23, 7
    %v25 = vsub.s32 0, %v24
    %v26 = vrot.slane %v19, %v25
    %vm27 = vcmask 261120
    %v29 = vsel %vm27, %v22, 0
    %31 = vmatprep.subr.mxu0 0.0
    %32 = vmatpush1.msra.mxu0 0.0
    %33 = vmatprep.subr.mxu0 0.0
    %34 = vmatpush1.msra.mxu0 0.0
    %35 = vmatprep.subr.mxu0 0.0
    %36 = vmatpush1.msra.mxu0 0.0
    %37 = vmatprep.subr.mxu0 0.0
    %38 = vmatpush1.msra.mxu0 0.0
    %39 = vmatprep.subr.mxu0 0.0
    %40 = vmatpush1.msra.mxu0 0.0
    %41 = vmatprep.subr.mxu0 0.0
    %42 = vmatpush1.msra.mxu0 0.0
    %43 = vmatprep.subr.mxu0 0.0
    %44 = vmatpush1.msra.mxu0 0.0
    %45 = vmatprep.subr.mxu0 0.0
    %46 = vmatpush1.msra.mxu0 0.0
    %47 = vmatprep.subr.mxu0 0.0
    %48 = vmatpush1.msra.mxu0 0.0
    %49 = vmatprep.subr.mxu0 0.0
    %50 = vmatpush1.msra.mxu0 0.0
    %51 = vmatprep.subr.mxu0 0.0
    %52 = vmatpush1.msra.mxu0 0.0
    %53 = vmatprep.subr.mxu0 0.0
    %54 = vmatpush1.msra.mxu0 0.0
    %55 = vmatprep.subr.mxu0 0.0
    %56 = vmatpush1.msra.mxu0 %v18
    %57 = vmatprep.subr.mxu0 0.0
    %58 = vmatpush1.msra.mxu0 %v17
    %59 = vmatprep.subr.mxu0 0.0
    %60 = vmatpush1.msra.mxu0 %v16
    %61 = vmatprep.subr.mxu0 0.0
    %62 = vmatpush1.msra.mxu0 %v15
    %63 = vmatprep.subr.mxu0 0.0
    %64 = vmatpush2.msra.mxu0 0.0
    %65 = vmatprep.subr.mxu0 0.0
    %66 = vmatpush2.msra.mxu0 0.0
    %67 = vmatprep.subr.mxu0 0.0
    %68 = vmatpush2.msra.mxu0 0.0
    %69 = vmatprep.subr.mxu0 0.0
    %70 = vmatpush2.msra.mxu0 0.0
    %71 = vmatprep.subr.mxu0 0.0
    %72 = vmatpush2.msra.mxu0 0.0
    %73 = vmatprep.subr.mxu0 0.0
    %74 = vmatpush2.msra.mxu0 0.0
    %75 = vmatprep.subr.mxu0 0.0
    %76 = vmatpush2.msra.mxu0 0.0
    %77 = vmatprep.subr.mxu0 0.0
    %78 = vmatpush2.msra.mxu0 0.0
    %79 = vmatprep.subr.mxu0 0.0
    %80 = vmatpush2.msra.mxu0 0.0
    %81 = vmatprep.subr.mxu0 0.0
    %82 = vmatpush2.msra.mxu0 0.0
    %83 = vmatprep.subr.mxu0 0.0
    %84 = vmatpush2.msra.mxu0 0.0
    %85 = vmatprep.subr.mxu0 0.0
    %86 = vmatpush2.msra.mxu0 0.0
    %87 = vmatprep.subr.mxu0 0.0
    %88 = vmatpush2.msra.mxu0 0.0
    %89 = vmatprep.subr.mxu0 0.0
    %90 = vmatpush2.msra.mxu0 0.0
    %91 = vmatprep.subr.mxu0 0.0
    %92 = vmatpush2.msra.mxu0 0.0
    %93 = vmatprep.subr.mxu0 0.0
    %94 = vmatpush2.msra.mxu0 0.0
    %95 = vmatprep.mubr.f32.mxu0 0.0
    %96 = vmatmul.mubr.f32.gmra.mxu0 %v29
    %v97 = vpop.f32.mrf.mxu0
    %v98 = vadd.f32 %v26, %v97
    %v99 = vpop.f32.mrf.mxu0
    %100 = vdwg.mxu0
    %v101 = vsub.f32 0.0, %v98
    %v102 = vmul.f32 %v101, 1.442695
    %v103 = vpow.pop %v102
    %v104 = vadd.f32 %v103, 1.0
    %v105 = vrcp.pop %v104
    %v106 = vmul.f32 %v98, %v105
    %v107 = vlaneseq
    %v108 = vshrl.u32 %v107, 7
    %v109 = vsub.s32 0, %v108
    %v110 = vrot.slane %v20, %v109
    %v111 = vmul.f32 %v106, %v110
    %vm112 = vcmask 130048
    %v113 = vsel %vm112, %v111, 0.0
    %114 = vadd.xlane.f32.xlu0 %v113
    %v115 = vpop.xlane.xlu0 %114
    %v116 = vlaneseq
    %v117 = vshrl.u32 %v116, 7
    %v118 = vsub.s32 0, %v117
    %v119 = vrot.slane %v21, %v118
    %v120 = vadd.f32 %v115, %v119
    %v121 = vsub.f32 0.0, %v120
    %v122 = vmul.f32 %v121, 1.442695
    %v123 = vpow.pop %v122
    %v124 = vadd.f32 %v123, 1.0
    %v125 = vrcp.pop %v124
    %v126 = vld [vmem:[%s2] sm:$0xff]
    %vm127 = vcmp.ne.s32.totalorder %v126, 4294967295
    %v128 = vsel %vm127, 1, 0
    %v129 = vcvt.s32.f32 %v128
    %vm130 = vcmp.eq.s32.totalorder %v126, 0
    %v131 = vsel %vm130, 1, 0
    %v132 = vcvt.s32.f32 %v131
    %vm133 = vcmp.eq.s32.totalorder %v126, 1
    %v134 = vsel %vm133, 1, 0
    %v135 = vcvt.s32.f32 %v134
    %136 = vadd.xlane.f32.xlu0 %v132
    %v137 = vpop.xlane.xlu0 %136
    %138 = vadd.xlane.f32.xlu0 %v135
    %v139 = vpop.xlane.xlu0 %138
    %vm140 = vcmp.gt.f32.partialorder %v139, %v137
    %v141 = vsel %vm140, 1, 0
    %vm142 = vcmp.eq.s32.totalorder %v141, 1
    %v143 = vsel %vm142, %v135, %v132
    %v144 = vrot.slane %v143, 4
    %v145 = vadd.f32 %v143, %v144
    %v146 = vrot.slane %v145, 2
    %v147 = vadd.f32 %v145, %v146
    %v148 = vrot.slane %v147, 1
    %v149 = vadd.f32 %v147, %v148
    %v150 = vrot.slane %v129, 4
    %v151 = vadd.f32 %v129, %v150
    %v152 = vrot.slane %v151, 2
    %v153 = vadd.f32 %v151, %v152
    %v154 = vrot.slane %v153, 1
    %v155 = vadd.f32 %v153, %v154
    %vm156 = vcmp.gt.f32.partialorder %v155, 0.0
    %v157 = vmax.f32 %v155, 1.0
    %v158 = vrcp.pop %v157
    %v159 = vmul.f32 %v149, %v158
    %v160 = vsel %vm156, %v159, 0.5
    %v161 = vsub.f32 1.0, %v125
    %163 = vset.pattern.permute.xlu0 0
    %164 = vperm.xlu0 %163, %v161
    %v165 = vpop.permute.xlu0 %164
    %v167 = vmul.f32 %v160, %v165
    %v168 = vmul.f32 %v132, %v167
    %169 = vadd.xlane.f32.xlu0 %v168
    %v170 = vpop.xlane.xlu0 %169
    %v171 = vmul.f32 %v135, %v167
    %172 = vadd.xlane.f32.xlu0 %v171
    %v173 = vpop.xlane.xlu0 %172
    %vm174 = vcmp.gt.f32.partialorder %v173, %v170
    %v175 = vsel %vm174, 1.0, 0.0
    %v176 = vlaneseq
    %v177 = vand.u32 %v176, 127
    %vm178 = vcmp.eq.s32.totalorder %v177, 16
    %v179 = vsel %vm178, %v175, %v160
    %180 = vst [vmem:[#allocation2] sm:$0xff] %v179
    // Predicated region
    $region14: #{tpu_custom_call.1} parent=1 // pred_check
      _
    $region15: #{tpu_custom_call.1} parent=1 // pred_check_branch
      %182 = sbr.rel (0) target = $region17
    $region16: #{tpu_custom_call.1} parent=1 // pred_region
      %s184 = ssub.s32 128, 128
      %185 = vsyncadd [#allocation3], %s184
      %s187 = sshll.u32 [#allocation2], 4
      %s188 = int_to_ptr.vmem [resolvable:$true] %s187
      %190 = dma.vmem_to_hbm [thread:$0]  %s188, 128, %s3, [#allocation3]
    $region17: #{tpu_custom_call.1} parent=1 // pred_fallthru
      _
    // Predicated region
    $region18: #{tpu_custom_call.1} parent=1 // pred_check
      _
    $region19: #{tpu_custom_call.1} parent=1 // pred_check_branch
      %192 = sbr.rel (0) target = $region21
    $region20: #{tpu_custom_call.1} parent=1 // pred_region
      %193 = dma.done [#allocation3], 128
    $region21: #{tpu_custom_call.1} parent=1 // pred_fallthru
      _
    %194 = vsyncpa [#allocation3], 1

</llo_original>
